<compile_context>
chip_gen: v5e
topology: v5e:2x2
jax: 0.10.0
libtpu: 0.0.40
codegen_flags: <defaults>
</compile_context>

<pallas_src>
import jax
import jax.numpy as jnp
from jax.experimental import pallas as pl
from jax.experimental.pallas import tpu as pltpu


# ----------------------------------------------------------------------------
# Kernel
# ----------------------------------------------------------------------------
def _mlp_kernel(x_ref, w1_ref, b1_ref, w2_ref, b2_ref, o_ref):
    # x_ref : (TP, G*M)    packed rows (G original rows per packed row)
    # w1_ref: (G*M, G*Hp)  block-diagonal first linear weight
    # b1_ref: (1, G*Hp)
    # w2_ref: (G*Hp, G*Hp) block-diagonal second linear weight
    # b2_ref: (1, G*Hp)
    # o_ref : (TP, G*Hp)
    h = jnp.dot(x_ref[...], w1_ref[...], preferred_element_type=jnp.float32)
    h = jnp.maximum(h + b1_ref[...].astype(jnp.float32), 0.0)
    y = jnp.dot(h.astype(w2_ref.dtype), w2_ref[...],
                preferred_element_type=jnp.float32)
    y = y + b2_ref[...].astype(jnp.float32)
    o_ref[...] = y.astype(o_ref.dtype)


# ----------------------------------------------------------------------------
# Weight packing (done once at init, reused by every forward call)
# ----------------------------------------------------------------------------
def _block_diag(w, g):
    """block_diag(w, ..., w) with g copies -> shape (g*in, g*out)."""
    if g == 1:
        return w
    kin, kout = w.shape
    eye = jnp.eye(g, dtype=w.dtype)
    bd = eye[:, None, :, None] * w[None, :, None, :]   # (g, in, g, out)
    return bd.reshape(g * kin, g * kout)


def pack_params(w1, b1, w2, b2, *, lane_width=128, compute_dtype=None):
    """Pack nn.Linear-style params (stored (in, out)) into lane-dense form.

    Returns a dict with the block-diagonal weights plus packing metadata.
    `compute_dtype` (e.g. jnp.bfloat16) optionally casts the weights for a
    lower-bandwidth MXU path; accumulation stays f32 in the kernel.
    """
    assert lane_width & (lane_width - 1) == 0, "lane_width must be a power of 2"
    M, H = w1.shape
    if compute_dtype is not None:
        w1, b1, w2, b2 = (a.astype(compute_dtype) for a in (w1, b1, w2, b2))

    # Pad H -> Hp so that G * Hp == lane_width (H <= lane_width) or Hp is a
    # multiple of lane_width (H > lane_width).  Padded columns carry zero
    # weights and zero biases, so they produce exact zeros and are dropped in
    # the wrapper -- the packed matmul is exactly the original per-row MLP.
    if H <= lane_width:
        hp = 1
        while hp < H:
            hp *= 2
        G = lane_width // hp
    else:
        hp = pl.cdiv(H, lane_width) * lane_width
        G = 1
    if hp != H:
        w1 = jnp.pad(w1, ((0, 0), (0, hp - H)))
        b1 = jnp.pad(b1, ((0, hp - H),))
        w2 = jnp.pad(w2, ((0, hp - H), (0, hp - H)))
        b2 = jnp.pad(b2, ((0, hp - H),))

    return dict(
        w1p=_block_diag(w1, G),
        w2p=_block_diag(w2, G),
        b1p=jnp.tile(b1, G).reshape(1, G * hp),
        b2p=jnp.tile(b2, G).reshape(1, G * hp),
        G=int(G), Hp=int(hp), H=int(H), M=int(M),
    )


# ----------------------------------------------------------------------------
# Tile / grid selection
# ----------------------------------------------------------------------------
def _choose_tiling(np_rows, kin, kout, in_isz, out_isz, w_isz, row_pack,
                   max_rows_per_step=None):
    TILE_TARGET = 2 << 20    # ~2 MiB per x tile per grid step
    VMEM_BUDGET = 12 << 20   # conservative vs v5e's 16 MiB scoped-VMEM default
    MAX_TP = 2048

    weight_bytes = (kin * kout + kout * kout + 2 * kout) * w_isz  # Buffered(1)
    per_row = (2 * kin * in_isz       # x tile, double-buffered
               + 2 * kout * out_isz   # out tile, double-buffered
               + 2 * kout * 4         # f32 intermediates (h, y)
               + kout * w_isz)        # cast of h fed to the second matmul

    tp_vmem = (VMEM_BUDGET - weight_bytes) // per_row
    tp_tile = TILE_TARGET // max(1, kin * in_isz)
    tp_max = max(row_pack, min(tp_vmem, tp_tile, MAX_TP))
    if max_rows_per_step is not None:
        tp_max = min(tp_max, max(row_pack, max_rows_per_step))
    tp_max = max(row_pack, (tp_max // row_pack) * row_pack)

    steps = pl.cdiv(np_rows, tp_max)
    # Keep the DMA pipeline alive and both v7x TensorCores busy: at least 2
    # (and an even number of) grid steps whenever there is enough work.
    if np_rows >= 512 and steps < 2:
        steps = 2
    if steps > 1 and steps % 2 == 1:
        steps += 1

    tp = pl.cdiv(np_rows, steps)
    tp = max(row_pack, pl.cdiv(tp, row_pack) * row_pack)
    return tp, steps, weight_bytes, per_row


def _const_spec(shape):
    """Constant-index (VMEM-resident) weight BlockSpec, single-buffered."""
    try:
        return pl.BlockSpec(shape, lambda i: (0, 0), pipeline_mode=pl.Buffered(1))
    except TypeError:  # older jax without pipeline_mode on BlockSpec
        return pl.BlockSpec(shape, lambda i: (0, 0))


# ----------------------------------------------------------------------------
# Forward
# ----------------------------------------------------------------------------
def region_embedding_mlp(x, packed, *, max_rows_per_step=None):
    """x: (batch, M, M) -> (batch, M, H) using weights packed by pack_params."""
    batch, M, M2 = x.shape
    assert M == M2, "input must be (batch, M, M) with M == num_regions"
    assert M == packed["M"], "x's region dim must match the packed weights"

    G, Hp, H = packed["G"], packed["Hp"], packed["H"]
    w1p, b1p, w2p, b2p = packed["w1p"], packed["b1p"], packed["w2p"], packed["b2p"]
    kin, kout = G * M, G * Hp
    N = batch * M
    out_dtype = x.dtype

    # Feed the MXU the packed-weight dtype (enables the bf16 bandwidth path
    # when pack_params(compute_dtype=bf16) was used).
    x2d = x.reshape(N, M)
    if x2d.dtype != w1p.dtype:
        x2d = x2d.astype(w1p.dtype)

    in_isz = jnp.dtype(x2d.dtype).itemsize
    out_isz = jnp.dtype(out_dtype).itemsize
    w_isz = jnp.dtype(w1p.dtype).itemsize
    row_pack = max(8, 32 // in_isz)          # 8 f32 / 16 bf16 / 32 int8 sublanes

    np_rows = pl.cdiv(N, G)                  # packed rows actually needed
    tp, steps, weight_bytes, per_row = _choose_tiling(
        np_rows, kin, kout, in_isz, out_isz, w_isz, row_pack, max_rows_per_step)

    # Pad rows so np_pad == steps * tp: no ragged last step, exact G-fold.
    np_pad = steps * tp
    n_pad = np_pad * G
    if n_pad > N:
        x2d = jnp.pad(x2d, ((0, n_pad - N), (0, 0)))
    x_packed = x2d.reshape(np_pad, kin)      # contiguous row-major regroup

    # Accurate (packed) advisory cost estimate.
    flops = 2 * np_pad * (kin * kout + kout * kout)
    bytes_accessed = (np_pad * kin * in_isz + np_pad * kout * out_isz
                      + (kin * kout + kout * kout + 2 * kout) * w_isz)

    # Raise the scoped-VMEM limit only if the packed weights alone blow the
    # conservative budget (huge M / H); stays well below v7x's 64 MiB physical.
    est_vmem = weight_bytes + tp * per_row
    vmem_limit = int(min(est_vmem + (4 << 20), 56 << 20)) if est_vmem > (12 << 20) else None

    out2d = pl.pallas_call(
        _mlp_kernel,
        out_shape=jax.ShapeDtypeStruct((np_pad, kout), out_dtype),
        grid=(steps,),
        in_specs=[
            pl.BlockSpec((tp, kin), lambda i: (i, 0)),
            _const_spec((kin, kout)),
            _const_spec((1, kout)),
            _const_spec((kout, kout)),
            _const_spec((1, kout)),
        ],
        out_specs=pl.BlockSpec((tp, kout), lambda i: (i, 0)),
        compiler_params=pltpu.CompilerParams(
            dimension_semantics=("parallel",),
            vmem_limit_bytes=vmem_limit),
        cost_estimate=pl.CostEstimate(
            flops=flops, transcendentals=0, bytes_accessed=bytes_accessed),
    )(x_packed, w1p, b1p, w2p, b2p)

    # Unfold packed rows, drop row/column padding.
    out = out2d.reshape(np_pad * G, Hp)[:N, :H]
    return out.reshape(batch, M, H)


# ----------------------------------------------------------------------------
# Reference + init helpers
# ----------------------------------------------------------------------------
def init_params(key, num_regions, hidden_dim, dtype=jnp.float32):
    """nn.Linear-style params stored as (in, out): y = x @ W + b."""
    k1, k2, k3, k4 = jax.random.split(key, 4)
    bound1 = 1.0 / jnp.sqrt(num_regions)
    bound2 = 1.0 / jnp.sqrt(hidden_dim)
    w1 = jax.random.uniform(k1, (num_regions, hidden_dim), dtype, -bound1, bound1)
    b1 = jax.random.uniform(k2, (hidden_dim,), dtype, -bound1, bound1)
    w2 = jax.random.uniform(k3, (hidden_dim, hidden_dim), dtype, -bound2, bound2)
    b2 = jax.random.uniform(k4, (hidden_dim,), dtype, -bound2, bound2)
    return w1, b1, w2, b2


def _reference(x, w1, b1, w2, b2):
    b, m, _ = x.shape
    x2d = x.reshape(b * m, m)
    y = jnp.maximum(x2d @ w1 + b1, 0.0) @ w2 + b2
    return y.reshape(b, m, -1)


if __name__ == "__main__":
    key = jax.random.PRNGKey(0)
    kx1, kp1, kx2, kp2, kx3, kp3 = jax.random.split(key, 6)

    # Case 1: small shapes per the module contract (x is (batch, M, M)).
    batch, M, H = 2, 8, 32
    x = jax.random.normal(kx1, (batch, M, M), jnp.float32)
    w1, b1, w2, b2 = init_params(kp1, M, H)
    packed = pack_params(w1, b1, w2, b2)                # pack weights once
    out = jax.block_until_ready(region_embedding_mlp(x, packed))
    ref = _reference(x, w1, b1, w2, b2)
    assert out.shape == (batch, M, H)
    assert jnp.allclose(out, ref, atol=1e-4, rtol=1e-4)

    # Case 2: multi-step pipeline (grid > 1, even number of steps).
    batch2, M2, H2 = 16, 64, 32
    x2 = jax.random.normal(kx2, (batch2, M2, M2), jnp.float32)
    params2 = init_params(kp2, M2, H2)
    packed2 = pack_params(*params2)
    out2 = jax.block_until_ready(
        region_embedding_mlp(x2, packed2, max_rows_per_step=64))
    ref2 = _reference(x2, *params2)
    assert out2.shape == (batch2, M2, H2)
    assert jnp.allclose(out2, ref2, atol=1e-4, rtol=1e-4)

    # Case 3: padding path -- H does not divide 128 and batch*M % G != 0.
    batch3, M3, H3 = 3, 40, 24
    x3 = jax.random.normal(kx3, (batch3, M3, M3), jnp.float32)
    params3 = init_params(kp3, M3, H3)
    packed3 = pack_params(*params3)
    out3 = jax.block_until_ready(region_embedding_mlp(x3, packed3))
    ref3 = _reference(x3, *params3)
    assert out3.shape == (batch3, M3, H3)
    assert jnp.allclose(out3, ref3, atol=1e-4, rtol=1e-4)

    print("KERNEL_OK")
</pallas_src>

<mosaic_0001>
module attributes {stable_mosaic.version = 11 : i64} {
  func.func @_mlp_kernel(%arg0: i32, %arg1: memref<8x32xf32, #tpu.memory_space<vmem>>, %arg2: memref<32x128xf32, #tpu.memory_space<vmem>>, %arg3: memref<1x128xf32, #tpu.memory_space<vmem>>, %arg4: memref<128x128xf32, #tpu.memory_space<vmem>>, %arg5: memref<1x128xf32, #tpu.memory_space<vmem>>, %arg6: memref<8x128xf32, #tpu.memory_space<vmem>>) attributes {dimension_semantics = [#tpu.dimension_semantics<parallel>], iteration_bounds = array<i64: 1>, scalar_prefetch = 0 : i64, scratch_operands = 0 : i64, tpu.core_type = #tpu.core_type<tc>, window_params = [{transform_indices = @transform_0, window_bounds = array<i64: 8, 32>}, {pipeline_mode = #tpu.pipeline_mode<synchronous>, transform_indices = @transform_1, window_bounds = array<i64: 32, 128>}, {pipeline_mode = #tpu.pipeline_mode<synchronous>, transform_indices = @transform_2, window_bounds = array<i64: 1, 128>}, {pipeline_mode = #tpu.pipeline_mode<synchronous>, transform_indices = @transform_3, window_bounds = array<i64: 128, 128>}, {pipeline_mode = #tpu.pipeline_mode<synchronous>, transform_indices = @transform_4, window_bounds = array<i64: 1, 128>}, {transform_indices = @transform_5, window_bounds = array<i64: 8, 128>}]} {
    %c0 = arith.constant 0 : index
    %c0_0 = arith.constant 0 : index
    %0 = vector.load %arg1[%c0, %c0_0] : memref<8x32xf32, #tpu.memory_space<vmem>>, vector<8x32xf32>
    %c0_1 = arith.constant 0 : index
    %c0_2 = arith.constant 0 : index
    %1 = vector.load %arg2[%c0_1, %c0_2] : memref<32x128xf32, #tpu.memory_space<vmem>>, vector<32x128xf32>
    %cst = arith.constant dense<0.000000e+00> : vector<8x128xf32>
    %2 = tpu.matmul %0, %1, %cst {dimension_numbers = #tpu.dot_dimension_numbers<[1], [0], [0], [1], [0, 0, 1, 1], [], []>} : vector<8x32xf32>, vector<32x128xf32>, vector<8x128xf32> -> vector<8x128xf32>
    %c0_3 = arith.constant 0 : index
    %c0_4 = arith.constant 0 : index
    %3 = vector.load %arg3[%c0_3, %c0_4] : memref<1x128xf32, #tpu.memory_space<vmem>>, vector<1x128xf32>
    %4 = vector.broadcast %3 : vector<1x128xf32> to vector<8x128xf32>
    %5 = arith.addf %2, %4 : vector<8x128xf32>
    %cst_5 = arith.constant 0.000000e+00 : f32
    %6 = vector.broadcast %cst_5 : f32 to vector<8x128xf32>
    %7 = arith.maximumf %5, %6 : vector<8x128xf32>
    %c0_6 = arith.constant 0 : index
    %c0_7 = arith.constant 0 : index
    %8 = vector.load %arg4[%c0_6, %c0_7] : memref<128x128xf32, #tpu.memory_space<vmem>>, vector<128x128xf32>
    %cst_8 = arith.constant dense<0.000000e+00> : vector<8x128xf32>
    %9 = tpu.matmul %7, %8, %cst_8 {dimension_numbers = #tpu.dot_dimension_numbers<[1], [0], [0], [1], [0, 0, 1, 1], [], []>} : vector<8x128xf32>, vector<128x128xf32>, vector<8x128xf32> -> vector<8x128xf32>
    %c0_9 = arith.constant 0 : index
    %c0_10 = arith.constant 0 : index
    %10 = vector.load %arg5[%c0_9, %c0_10] : memref<1x128xf32, #tpu.memory_space<vmem>>, vector<1x128xf32>
    %11 = vector.broadcast %10 : vector<1x128xf32> to vector<8x128xf32>
    %12 = arith.addf %9, %11 : vector<8x128xf32>
    %c0_11 = arith.constant 0 : index
    %c0_12 = arith.constant 0 : index
    %13 = vector.load %arg6[%c0_11, %c0_12] : memref<8x128xf32, #tpu.memory_space<vmem>>, vector<8x128xf32>
    tpu.vector_store %arg6[%c0_11, %c0_12], %12 {strides = array<i32>} : memref<8x128xf32, #tpu.memory_space<vmem>>, vector<8x128xf32>,
    return
  }
  func.func @transform_0(%arg0: i32) -> (i32, i32) {
    %c0_i32 = arith.constant 0 : i32
    %c0_i32_0 = arith.constant 0 : i32
    return %arg0, %c0_i32 : i32, i32
  }
  func.func @transform_1(%arg0: i32) -> (i32, i32) {
    %c0_i32 = arith.constant 0 : i32
    %c0_i32_0 = arith.constant 0 : i32
    %c0_i32_1 = arith.constant 0 : i32
    return %c0_i32, %c0_i32_0 : i32, i32
  }
  func.func @transform_2(%arg0: i32) -> (i32, i32) {
    %c0_i32 = arith.constant 0 : i32
    %c0_i32_0 = arith.constant 0 : i32
    %c0_i32_1 = arith.constant 0 : i32
    return %c0_i32, %c0_i32_0 : i32, i32
  }
  func.func @transform_3(%arg0: i32) -> (i32, i32) {
    %c0_i32 = arith.constant 0 : i32
    %c0_i32_0 = arith.constant 0 : i32
    %c0_i32_1 = arith.constant 0 : i32
    return %c0_i32, %c0_i32_0 : i32, i32
  }
  func.func @transform_4(%arg0: i32) -> (i32, i32) {
    %c0_i32 = arith.constant 0 : i32
    %c0_i32_0 = arith.constant 0 : i32
    %c0_i32_1 = arith.constant 0 : i32
    return %c0_i32, %c0_i32_0 : i32, i32
  }
  func.func @transform_5(%arg0: i32) -> (i32, i32) {
    %c0_i32 = arith.constant 0 : i32
    %c0_i32_0 = arith.constant 0 : i32
    return %arg0, %c0_i32 : i32, i32
  }
}

</mosaic_0001>

<llo_original>
// kernel: tpu_custom_call.1
$region0: #{tpu_custom_call.1}
  #allocation0 [shape = 'u32[]', space=smem, size = 0x4, offset = 0x4, fixed_abs, tag = 'smem constant byte address 0x4 - core index']
  #allocation1 [shape = 'u32[72,128]{1,0:T(1,128)}', space=vmem, size = 0x9000, scoped, tag = 'internal scratch']
  %s0 = inlined_call_operand.hbm [shape: f32[8,32], index: 0, kind: input, shape index: {}]
  %s1 = inlined_call_operand.hbm [shape: f32[32,128], index: 1, kind: input, shape index: {}]
  %s2 = inlined_call_operand.vmem [shape: f32[1,128], index: 2, kind: input, shape index: {}]
  %s3 = inlined_call_operand.hbm [shape: f32[128,128], index: 3, kind: input, shape index: {}]
  %s4 = inlined_call_operand.vmem [shape: f32[1,128], index: 4, kind: input, shape index: {}]
  %s5 = inlined_call_operand.hbm [shape: f32[8,128], index: 5, kind: output, shape index: {}]
  %s6 = sld [smem:[#allocation0]]
  $region42: #{tpu_custom_call.1} parent=0
    _
  %s8 = ssub.s32 1, %s6
  %s9 = scalar_select 0, %s8, %s6
  $region1: #{tpu_custom_call.1} parent=0
    #allocation2 [shape = 'u8[4096]{0}', space=vmem, size = 0x1000, scoped, tag = 'input window, operand 0, single buffered']
    #allocation3 [shape = 's32[1]{0}', space=sflag, size = 0x4, scoped, tag = 'scoped memory for tpu_custom_call.1']
    #allocation4 [shape = 's32[1]{0}', space=sflag, size = 0x4, scoped, tag = 'scoped memory for tpu_custom_call.1']
    #allocation5 [shape = 'u8[16384]{0}', space=vmem, size = 0x4000, scoped, tag = 'input window, operand 1, single buffered']
    #allocation6 [shape = 's32[1]{0}', space=sflag, size = 0x4, scoped, tag = 'scoped memory for tpu_custom_call.1']
    #allocation7 [shape = 'u8[65536]{0}', space=vmem, size = 0x10000, scoped, tag = 'input window, operand 3, single buffered']
    #allocation8 [shape = 'u8[4096]{0}', space=vmem, size = 0x1000, scoped, tag = 'output window, operand 0, single buffered']
    %10 = vsyncpa [#allocation3], 0
    %11 = vsyncpa [#allocation6], 0
    %12 = vsyncpa [#allocation4], 0
    // Predicated region
    $region2: #{tpu_custom_call.1} parent=1 // pred_check
      _
    $region3: #{tpu_custom_call.1} parent=1 // pred_check_branch
      %14 = sbr.rel (0) target = $region5
    $region4: #{tpu_custom_call.1} parent=1 // pred_region
      %16 = vsyncadd [#allocation3], 0
      %s18 = sshll.u32 %s0, 4
      %s19 = int_to_ptr.hbm [resolvable:$true] %s18
      %s20 = sshll.u32 [#allocation2], 4
      %s21 = int_to_ptr.vmem [resolvable:$true] %s20
      %23 = dma.hbm_to_vmem [thread:$0]  %s19, 128, %s21, [#allocation3]
    $region5: #{tpu_custom_call.1} parent=1 // pred_fallthru
      _
    // Predicated region
    $region6: #{tpu_custom_call.1} parent=1 // pred_check
      _
    $region7: #{tpu_custom_call.1} parent=1 // pred_check_branch
      %25 = sbr.rel (0) target = $region9
    $region8: #{tpu_custom_call.1} parent=1 // pred_region
      %27 = vsyncadd [#allocation6], 0
      %s28 = sshll.u32 %s1, 4
      %s29 = int_to_ptr.hbm [resolvable:$true] %s28
      %s30 = sshll.u32 [#allocation5], 4
      %s31 = int_to_ptr.vmem [resolvable:$true] %s30
      %36 = dma.hbm_to_vmem [thread:$0]  %s29, 512, %s31, [#allocation6], 128, 128, 8
    $region9: #{tpu_custom_call.1} parent=1 // pred_fallthru
      _
    // Predicated region
    $region10: #{tpu_custom_call.1} parent=1 // pred_check
      _
    $region11: #{tpu_custom_call.1} parent=1 // pred_check_branch
      %38 = sbr.rel (0) target = $region13
    $region12: #{tpu_custom_call.1} parent=1 // pred_region
      _
    $region13: #{tpu_custom_call.1} parent=1 // pred_fallthru
      _
    // Predicated region
    $region14: #{tpu_custom_call.1} parent=1 // pred_check
      _
    $region15: #{tpu_custom_call.1} parent=1 // pred_check_branch
      %40 = sbr.rel (0) target = $region17
    $region16: #{tpu_custom_call.1} parent=1 // pred_region
      %42 = vsyncadd [#allocation6], 0
      %s43 = sshll.u32 %s3, 4
      %s44 = int_to_ptr.hbm [resolvable:$true] %s43
      %s45 = sshll.u32 [#allocation7], 4
      %s46 = int_to_ptr.vmem [resolvable:$true] %s45
      %51 = dma.hbm_to_vmem [thread:$0]  %s44, 2048, %s46, [#allocation6], 128, 128, 8
    $region17: #{tpu_custom_call.1} parent=1 // pred_fallthru
      _
    // Predicated region
    $region18: #{tpu_custom_call.1} parent=1 // pred_check
      _
    $region19: #{tpu_custom_call.1} parent=1 // pred_check_branch
      %53 = sbr.rel (0) target = $region21
    $region20: #{tpu_custom_call.1} parent=1 // pred_region
      _
    $region21: #{tpu_custom_call.1} parent=1 // pred_fallthru
      _
    // Predicated region
    $region22: #{tpu_custom_call.1} parent=1 // pred_check
      _
    $region23: #{tpu_custom_call.1} parent=1 // pred_check_branch
      %55 = sbr.rel (0) target = $region25
    $region24: #{tpu_custom_call.1} parent=1 // pred_region
      %57 = dma.done [#allocation3], 128
    $region25: #{tpu_custom_call.1} parent=1 // pred_fallthru
      _
    // Predicated region
    $region26: #{tpu_custom_call.1} parent=1 // pred_check
      _
    $region27: #{tpu_custom_call.1} parent=1 // pred_check_branch
      %59 = sbr.rel (0) target = $region29
    $region28: #{tpu_custom_call.1} parent=1 // pred_region
      %61 = dma.done [#allocation6], 512
    $region29: #{tpu_custom_call.1} parent=1 // pred_fallthru
      _
    // Predicated region
    $region30: #{tpu_custom_call.1} parent=1 // pred_check
      _
    $region31: #{tpu_custom_call.1} parent=1 // pred_check_branch
      %63 = sbr.rel (0) target = $region33
    $region32: #{tpu_custom_call.1} parent=1 // pred_region
      %65 = dma.done [#allocation6], 2048
    $region33: #{tpu_custom_call.1} parent=1 // pred_fallthru
      _
    %v66 = vld [vmem:[#allocation2] sm:$0xff]
    %v67 = vld [vmem:[#allocation5] sm:$0xff]
    %v68 = vld [vmem:[#allocation5 + $0x8] sm:$0xff]
    %v69 = vld [vmem:[#allocation5 + $0x10] sm:$0xff]
    %v70 = vld [vmem:[#allocation5 + $0x18] sm:$0xff]
    %v71 = vld [vmem:[%s2] sm:$0x1]
    %v73 = vperm.slane %v71, 0
    %vm75 = vcmask 261120
    %v77 = vsel %vm75, %v66, 0
    %79 = vmatpush.msra.mxu0 0.0
    %80 = vmatpush.msra.mxu0 0.0
    %81 = vmatpush.msra.mxu0 0.0
    %82 = vmatpush.msra.mxu0 0.0
    %83 = vmatpush.msra.mxu0 0.0
    %84 = vmatpush.msra.mxu0 0.0
    %85 = vmatpush.msra.mxu0 0.0
    %86 = vmatpush.msra.mxu0 0.0
    %87 = vmatpush.msra.mxu0 0.0
    %88 = vmatpush.msra.mxu0 0.0
    %89 = vmatpush.msra.mxu0 0.0
    %90 = vmatpush.msra.mxu0 0.0
    %91 = vmatpush.msra.mxu0 %v70
    %92 = vmatpush.msra.mxu0 %v69
    %93 = vmatpush.msra.mxu0 %v68
    %94 = vmatpush.msra.mxu0 %v67
    %95 = vmatmul.f32.gmra.mxu0 %v77
    %v96 = vpop.f32.mrf.mxu0
    %v97 = vadd.f32 %v73, %v96
    %98 = vdwg.mxu0
    %v99 = vmax.f32 %v97, 0.0
    %v100 = vld [vmem:[#allocation7] sm:$0xff]
    %v101 = vld [vmem:[#allocation7 + $0x8] sm:$0xff]
    %v102 = vld [vmem:[#allocation7 + $0x10] sm:$0xff]
    %v103 = vld [vmem:[#allocation7 + $0x18] sm:$0xff]
    %v104 = vld [vmem:[#allocation7 + $0x20] sm:$0xff]
    %v105 = vld [vmem:[#allocation7 + $0x28] sm:$0xff]
    %v106 = vld [vmem:[#allocation7 + $0x30] sm:$0xff]
    %v107 = vld [vmem:[#allocation7 + $0x38] sm:$0xff]
    %v108 = vld [vmem:[#allocation7 + $0x40] sm:$0xff]
    %v109 = vld [vmem:[#allocation7 + $0x48] sm:$0xff]
    %v110 = vld [vmem:[#allocation7 + $0x50] sm:$0xff]
    %v111 = vld [vmem:[#allocation7 + $0x58] sm:$0xff]
    %v112 = vld [vmem:[#allocation7 + $0x60] sm:$0xff]
    %v113 = vld [vmem:[#allocation7 + $0x68] sm:$0xff]
    %v114 = vld [vmem:[#allocation7 + $0x70] sm:$0xff]
    %v115 = vld [vmem:[#allocation7 + $0x78] sm:$0xff]
    %v116 = vld [vmem:[%s4] sm:$0x1]
    %v118 = vperm.slane %v116, 0
    %120 = vmatpush.msra.mxu0 %v115
    %121 = vmatpush.msra.mxu0 %v114
    %122 = vmatpush.msra.mxu0 %v113
    %123 = vmatpush.msra.mxu0 %v112
    %124 = vmatpush.msra.mxu0 %v111
    %125 = vmatpush.msra.mxu0 %v110
    %126 = vmatpush.msra.mxu0 %v109
    %127 = vmatpush.msra.mxu0 %v108
    %128 = vmatpush.msra.mxu0 %v107
    %129 = vmatpush.msra.mxu0 %v106
    %130 = vmatpush.msra.mxu0 %v105
    %131 = vmatpush.msra.mxu0 %v104
    %132 = vmatpush.msra.mxu0 %v103
    %133 = vmatpush.msra.mxu0 %v102
    %134 = vmatpush.msra.mxu0 %v101
    %135 = vmatpush.msra.mxu0 %v100
    %136 = vmatmul.f32.gmra.mxu0 %v99
    %v137 = vpop.f32.mrf.mxu0
    %v138 = vadd.f32 %v118, %v137
    %139 = vdwg.mxu0
    %140 = vst [vmem:[#allocation8] sm:$0xff] %v138
    // Predicated region
    $region34: #{tpu_custom_call.1} parent=1 // pred_check
      _
    $region35: #{tpu_custom_call.1} parent=1 // pred_check_branch
      %142 = sbr.rel (0) target = $region37
    $region36: #{tpu_custom_call.1} parent=1 // pred_region
      %144 = vsyncadd [#allocation4], 0
      %s146 = sshll.u32 [#allocation8], 4
      %s147 = int_to_ptr.vmem [resolvable:$true] %s146
      %s148 = sshll.u32 %s5, 4
      %s149 = int_to_ptr.hbm [resolvable:$true] %s148
      %151 = dma.vmem_to_hbm [thread:$0]  %s147, 128, %s149, [#allocation4]
    $region37: #{tpu_custom_call.1} parent=1 // pred_fallthru
      _
    // Predicated region
    $region38: #{tpu_custom_call.1} parent=1 // pred_check
      _
    $region39: #{tpu_custom_call.1} parent=1 // pred_check_branch
      %153 = sbr.rel (0) target = $region41
    $region40: #{tpu_custom_call.1} parent=1 // pred_region
      %155 = dma.done [#allocation4], 128
    $region41: #{tpu_custom_call.1} parent=1 // pred_fallthru
      _
    %156 = vsyncpa [#allocation3], 1
    %157 = vsyncpa [#allocation6], 1
    %158 = vsyncpa [#allocation4], 1

</llo_original>
